<compile_context>
chip_gen: v7x
topology: tpu7x:2x2x1
jax: 0.10.0
libtpu: 0.0.40
codegen_flags: <defaults>
</compile_context>

<pallas_src>
import functools

import jax
import jax.numpy as jnp
from jax.experimental import pallas as pl
from jax.experimental.pallas import tpu as pltpu

LANE = 128
SUBLANE = 8


def _round_up(n, m):
    return ((n + m - 1) // m) * m


def _pad2d(a, rows, cols):
    """Zero-pad a 2-D array up to (rows, cols)."""
    out = jnp.zeros((rows, cols), a.dtype)
    return out.at[: a.shape[0], : a.shape[1]].set(a)


# ----------------------------------------------------------------------------
# Pallas kernel: fused 6-layer MLP (bf16 MXU inputs, f32 accumulation/VPU)
# ----------------------------------------------------------------------------
def _extended_mlp_kernel(x_ref, w1_ref, b_ref, w2_ref, wp_ref, o_ref, *, d1, p):
    # x_ref : (B, dim_in)    f32   (cast to bf16 here, not in the wrapper)
    # w1_ref: (dim_in, d1)   bf16
    # b_ref : (8, BW)        f32   row i = bias of layer i+1, zero padded
    # w2_ref: (d1, p)        bf16
    # wp_ref: (4, p, p)      bf16  -> w3, w4, w5, w_out (zero padded)
    # o_ref : (B, p)         f32   lane-dense output slab

    # layer 1
    x = x_ref[...].astype(jnp.bfloat16)
    h = jnp.dot(x, w1_ref[...], preferred_element_type=jnp.float32)
    h = jnp.maximum(h + b_ref[0:1, :d1], 0.0)

    # layer 2
    h = jnp.dot(h.astype(jnp.bfloat16), w2_ref[...],
                preferred_element_type=jnp.float32)
    h = jnp.maximum(h + b_ref[1:2, :p], 0.0)

    # layers 3..5 (statically unrolled)
    for i in range(3):
        h = jnp.dot(h.astype(jnp.bfloat16), wp_ref[i],
                    preferred_element_type=jnp.float32)
        h = jnp.maximum(h + b_ref[2 + i:3 + i, :p], 0.0)

    # output layer: no ReLU
    out = jnp.dot(h.astype(jnp.bfloat16), wp_ref[3],
                  preferred_element_type=jnp.float32)
    o_ref[...] = (out + b_ref[5:6, :p]).astype(o_ref.dtype)


# ----------------------------------------------------------------------------
# One-time parameter packing (hoisted out of the per-call path)
# ----------------------------------------------------------------------------
def prepare_params(params):
    """Pack / pad / cast all weights & biases ONCE.

    Returns (packed_buffers_dict, dim_out). Call once; reuse the result for
    every forward call.
    """
    w1, b1 = params["w1"], params["b1"]
    w2, b2 = params["w2"], params["b2"]
    w3, b3 = params["w3"], params["b3"]
    w4, b4 = params["w4"], params["b4"]
    w5, b5 = params["w5"], params["b5"]
    wo, bo = params["wo"], params["bo"]

    d1, d2, d3 = w1.shape[1], w2.shape[1], w3.shape[1]
    d4, d5, dim_out = w4.shape[1], w5.shape[1], wo.shape[1]

    # Unify d2..d5 and dim_out to one lane-aligned width P; keep d1 unpadded
    # (padding would double the dominant w1 HBM bytes -- see header note).
    P = max(_round_up(d, LANE) for d in (d2, d3, d4, d5, dim_out))
    BW = _round_up(max(d1, P), LANE)

    w1_b = w1.astype(jnp.bfloat16)                              # (dim_in, d1)
    w2_p = _pad2d(w2, d1, P).astype(jnp.bfloat16)               # (d1, P)
    wp = jnp.stack([_pad2d(w, P, P) for w in (w3, w4, w5, wo)]
                   ).astype(jnp.bfloat16)                       # (4, P, P)

    # Biases packed into one (8, BW) f32 array; padded entries are exactly 0,
    # so ReLU(0) = 0 keeps padded lanes zero and the math is unchanged.
    b_pack = jnp.zeros((SUBLANE, BW), jnp.float32)
    for i, (b, width) in enumerate(
        [(b1, d1), (b2, d2), (b3, d3), (b4, d4), (b5, d5), (bo, dim_out)]
    ):
        b_pack = b_pack.at[i, :width].set(b)

    packed = dict(
        w1=jax.device_put(w1_b),
        b=jax.device_put(b_pack),
        w2=jax.device_put(w2_p),
        wp=jax.device_put(wp),
    )
    return packed, int(dim_out)


# ----------------------------------------------------------------------------
# Per-call wrapper: reshape x, single pallas_call, lane slice (all under jit)
# ----------------------------------------------------------------------------
@functools.partial(jax.jit, static_argnames=("dim_out",))
def extended_mlp_forward(x_nchw, packed, *, dim_out):
    """x_nchw: (B, C, H, W) float32.  packed: output of prepare_params."""
    B, C, H, W = x_nchw.shape
    dim_in = C * H * W
    x2d = x_nchw.reshape(B, dim_in).astype(jnp.float32)  # == torch x.view(...)

    w1_b, b_pack, w2_p, wp = packed["w1"], packed["b"], packed["w2"], packed["wp"]
    d1 = w1_b.shape[1]
    P = wp.shape[-1]

    # Cost estimate from the cached packed-buffer sizes (kernel is tiny /
    # launch+DMA bound; this keeps XLA's scheduling hint accurate).
    flops = 2 * B * (dim_in * d1 + d1 * P + 4 * P * P)
    bytes_accessed = (x2d.size * 4 + w1_b.size * 2 + w2_p.size * 2
                      + wp.size * 2 + b_pack.size * 4 + B * P * 4)
    cost = pl.CostEstimate(flops=flops, transcendentals=0,
                           bytes_accessed=bytes_accessed)

    vmem = pl.BlockSpec(memory_space=pltpu.MemorySpace.VMEM)
    out_pad = pl.pallas_call(
        functools.partial(_extended_mlp_kernel, d1=d1, p=P),
        out_shape=jax.ShapeDtypeStruct((B, P), jnp.float32),
        in_specs=[vmem] * 5,
        out_specs=vmem,
        cost_estimate=cost,
    )(x2d, w1_b, b_pack, w2_p, wp)

    # Lane slice back to the logical (B, dim_out) result.  If the consumer can
    # take the 128-lane slab directly, return out_pad instead (one less op).
    return out_pad[:, :dim_out]


# ----------------------------------------------------------------------------
# Deterministic parameter construction (mirrors ExtendedMLP.__init__ structure)
# ----------------------------------------------------------------------------
def _linear_init(key, fan_in, fan_out):
    """PyTorch nn.Linear default init: U(-1/sqrt(fan_in), 1/sqrt(fan_in))."""
    kw, kb = jax.random.split(key)
    bound = 1.0 / jnp.sqrt(fan_in)
    # stored as (in, out)  ==  torch weight (out, in) transposed
    w = jax.random.uniform(kw, (fan_in, fan_out), jnp.float32, -bound, bound)
    b = jax.random.uniform(kb, (fan_out,), jnp.float32, -bound, bound)
    return w, b


def make_params(key, dim_in, h1, h2, h3, h4, h5, dim_out):
    d1, d2, d3, d4, d5 = h1 + 100, h2 + 50, h3 + 20, h4 + 10, h5 + 5
    keys = jax.random.split(key, 6)

    w1, b1 = _linear_init(keys[0], dim_in, d1)
    w2, b2 = _linear_init(keys[1], d1, d2)
    w3, b3 = _linear_init(keys[2], d2, d3)
    w4, b4 = _linear_init(keys[3], d3, d4)
    w5, b5 = _linear_init(keys[4], d4, d5)
    wo, bo = _linear_init(keys[5], d5, dim_out)

    # Reproduce the block-zeroing structure from __init__.
    # Our w is torch weight transposed:  w[c, r] == weight[r, c].
    #   torch: weight[h_out:, :h_in] = 0   ->   w[:h_in, h_out:] = 0
    #   torch: weight[:h_out, h_in:] = 0   ->   w[h_in:, :h_out] = 0
    def zero_cross(w, h_in, h_out):
        w = w.at[:h_in, h_out:].set(0.0)
        w = w.at[h_in:, :h_out].set(0.0)
        return w

    w2 = zero_cross(w2, h1, h2)
    w3 = zero_cross(w3, h2, h3)
    w4 = zero_cross(w4, h3, h4)
    w5 = zero_cross(w5, h4, h5)

    return dict(w1=w1, b1=b1, w2=w2, b2=b2, w3=w3, b3=b3,
                w4=w4, b4=b4, w5=w5, b5=b5, wo=wo, bo=bo)


# ----------------------------------------------------------------------------
# Pure-JAX references for verification
# ----------------------------------------------------------------------------
def reference_forward_f32(x_nchw, p):
    B, C, H, W = x_nchw.shape
    h = x_nchw.reshape(B, C * H * W)
    for wi, bi in [("w1", "b1"), ("w2", "b2"), ("w3", "b3"),
                   ("w4", "b4"), ("w5", "b5")]:
        h = jnp.maximum(h @ p[wi] + p[bi], 0.0)
    return h @ p["wo"] + p["bo"]


def reference_forward_bf16(x_nchw, p):
    """Same math as the kernel: bf16 MXU operands, f32 accumulation/bias/ReLU."""
    B, C, H, W = x_nchw.shape
    h = x_nchw.reshape(B, C * H * W)

    def lin(h, w, b, relu=True):
        y = jnp.dot(h.astype(jnp.bfloat16), w.astype(jnp.bfloat16),
                    preferred_element_type=jnp.float32) + b
        return jnp.maximum(y, 0.0) if relu else y

    h = lin(h, p["w1"], p["b1"])
    h = lin(h, p["w2"], p["b2"])
    h = lin(h, p["w3"], p["b3"])
    h = lin(h, p["w4"], p["b4"])
    h = lin(h, p["w5"], p["b5"])
    return lin(h, p["wo"], p["bo"], relu=False)


# ----------------------------------------------------------------------------
if __name__ == "__main__":
    key = jax.random.PRNGKey(0)
    k_x, k_p = jax.random.split(key)

    # Small shapes consistent with the module's forward (NCHW input, flattened).
    B, C, H, W = 2, 4, 16, 16
    dim_in = C * H * W                      # 1024
    h1 = h2 = h3 = h4 = h5 = 32
    dim_out = 10

    x = jax.random.normal(k_x, (B, C, H, W), dtype=jnp.float32)
    params = make_params(k_p, dim_in, h1, h2, h3, h4, h5, dim_out)

    # One-time packing (outside the per-call path).
    packed, out_dim = prepare_params(params)

    out = extended_mlp_forward(x, packed, dim_out=out_dim)
    out = jax.block_until_ready(out)
    assert out.shape == (B, dim_out)

    # Exact-math check vs a reference doing identical bf16/f32 mixed precision.
    ref_bf16 = reference_forward_bf16(x, params)
    assert jnp.allclose(out, ref_bf16, atol=1e-3, rtol=1e-3), \
        "mismatch vs bf16 reference"

    # Loose sanity check vs full-f32 reference (bf16 weight quantization drift).
    ref_f32 = reference_forward_f32(x, params)
    assert jnp.allclose(out, ref_f32, atol=1e-1, rtol=1e-1), \
        "mismatch vs f32 reference"

    print("KERNEL_OK")
</pallas_src>

<mosaic_0001>
module attributes {stable_mosaic.version = 11 : i64} {
  func.func @_extended_mlp_kernel(%arg0: memref<2x1024xf32, #tpu.memory_space<vmem>>, %arg1: memref<1024x132xbf16, #tpu.memory_space<vmem>>, %arg2: memref<8x256xf32, #tpu.memory_space<vmem>>, %arg3: memref<132x128xbf16, #tpu.memory_space<vmem>>, %arg4: memref<4x128x128xbf16, #tpu.memory_space<vmem>>, %arg5: memref<2x128xf32, #tpu.memory_space<vmem>>) attributes {dimension_semantics = [], scalar_prefetch = 0 : i64, scratch_operands = 0 : i64, tpu.core_type = #tpu.core_type<tc>} {
    %c0 = arith.constant 0 : index
    %c0_0 = arith.constant 0 : index
    %0 = vector.load %arg0[%c0, %c0_0] : memref<2x1024xf32, #tpu.memory_space<vmem>>, vector<2x1024xf32>
    %1 = arith.truncf %0 : vector<2x1024xf32> to vector<2x1024xbf16>
    %c0_1 = arith.constant 0 : index
    %c0_2 = arith.constant 0 : index
    %2 = vector.load %arg1[%c0_1, %c0_2] : memref<1024x132xbf16, #tpu.memory_space<vmem>>, vector<1024x132xbf16>
    %cst = arith.constant dense<0.000000e+00> : vector<2x132xf32>
    %3 = tpu.matmul %1, %2, %cst {dimension_numbers = #tpu.dot_dimension_numbers<[1], [0], [0], [1], [0, 0, 1, 1], [], []>} : vector<2x1024xbf16>, vector<1024x132xbf16>, vector<2x132xf32> -> vector<2x132xf32>
    %c0_3 = arith.constant 0 : index
    %c0_4 = arith.constant 0 : index
    %4 = vector.load %arg2[%c0_3, %c0_4] : memref<8x256xf32, #tpu.memory_space<vmem>>, vector<1x132xf32>
    %5 = vector.broadcast %4 : vector<1x132xf32> to vector<2x132xf32>
    %6 = arith.addf %3, %5 : vector<2x132xf32>
    %cst_5 = arith.constant 0.000000e+00 : f32
    %7 = vector.broadcast %cst_5 : f32 to vector<2x132xf32>
    %8 = arith.maximumf %6, %7 : vector<2x132xf32>
    %9 = arith.truncf %8 : vector<2x132xf32> to vector<2x132xbf16>
    %c0_6 = arith.constant 0 : index
    %c0_7 = arith.constant 0 : index
    %10 = vector.load %arg3[%c0_6, %c0_7] : memref<132x128xbf16, #tpu.memory_space<vmem>>, vector<132x128xbf16>
    %cst_8 = arith.constant dense<0.000000e+00> : vector<2x128xf32>
    %11 = tpu.matmul %9, %10, %cst_8 {dimension_numbers = #tpu.dot_dimension_numbers<[1], [0], [0], [1], [0, 0, 1, 1], [], []>} : vector<2x132xbf16>, vector<132x128xbf16>, vector<2x128xf32> -> vector<2x128xf32>
    %c1 = arith.constant 1 : index
    %c0_9 = arith.constant 0 : index
    %12 = vector.load %arg2[%c1, %c0_9] : memref<8x256xf32, #tpu.memory_space<vmem>>, vector<1x128xf32>
    %13 = vector.broadcast %12 : vector<1x128xf32> to vector<2x128xf32>
    %14 = arith.addf %11, %13 : vector<2x128xf32>
    %cst_10 = arith.constant 0.000000e+00 : f32
    %15 = vector.broadcast %cst_10 : f32 to vector<2x128xf32>
    %16 = arith.maximumf %14, %15 : vector<2x128xf32>
    %17 = arith.truncf %16 : vector<2x128xf32> to vector<2x128xbf16>
    %c0_11 = arith.constant 0 : index
    %c0_12 = arith.constant 0 : index
    %c0_13 = arith.constant 0 : index
    %18 = vector.load %arg4[%c0_11, %c0_12, %c0_13] : memref<4x128x128xbf16, #tpu.memory_space<vmem>>, vector<1x128x128xbf16>
    %19 = vector.shape_cast %18 : vector<1x128x128xbf16> to vector<128x128xbf16>
    %cst_14 = arith.constant dense<0.000000e+00> : vector<2x128xf32>
    %20 = tpu.matmul %17, %19, %cst_14 {dimension_numbers = #tpu.dot_dimension_numbers<[1], [0], [0], [1], [0, 0, 1, 1], [], []>} : vector<2x128xbf16>, vector<128x128xbf16>, vector<2x128xf32> -> vector<2x128xf32>
    %c2 = arith.constant 2 : index
    %c0_15 = arith.constant 0 : index
    %21 = vector.load %arg2[%c2, %c0_15] : memref<8x256xf32, #tpu.memory_space<vmem>>, vector<1x128xf32>
    %22 = vector.broadcast %21 : vector<1x128xf32> to vector<2x128xf32>
    %23 = arith.addf %20, %22 : vector<2x128xf32>
    %cst_16 = arith.constant 0.000000e+00 : f32
    %24 = vector.broadcast %cst_16 : f32 to vector<2x128xf32>
    %25 = arith.maximumf %23, %24 : vector<2x128xf32>
    %26 = arith.truncf %25 : vector<2x128xf32> to vector<2x128xbf16>
    %c1_17 = arith.constant 1 : index
    %c0_18 = arith.constant 0 : index
    %c0_19 = arith.constant 0 : index
    %27 = vector.load %arg4[%c1_17, %c0_18, %c0_19] : memref<4x128x128xbf16, #tpu.memory_space<vmem>>, vector<1x128x128xbf16>
    %28 = vector.shape_cast %27 : vector<1x128x128xbf16> to vector<128x128xbf16>
    %cst_20 = arith.constant dense<0.000000e+00> : vector<2x128xf32>
    %29 = tpu.matmul %26, %28, %cst_20 {dimension_numbers = #tpu.dot_dimension_numbers<[1], [0], [0], [1], [0, 0, 1, 1], [], []>} : vector<2x128xbf16>, vector<128x128xbf16>, vector<2x128xf32> -> vector<2x128xf32>
    %c3 = arith.constant 3 : index
    %c0_21 = arith.constant 0 : index
    %30 = vector.load %arg2[%c3, %c0_21] : memref<8x256xf32, #tpu.memory_space<vmem>>, vector<1x128xf32>
    %31 = vector.broadcast %30 : vector<1x128xf32> to vector<2x128xf32>
    %32 = arith.addf %29, %31 : vector<2x128xf32>
    %cst_22 = arith.constant 0.000000e+00 : f32
    %33 = vector.broadcast %cst_22 : f32 to vector<2x128xf32>
    %34 = arith.maximumf %32, %33 : vector<2x128xf32>
    %35 = arith.truncf %34 : vector<2x128xf32> to vector<2x128xbf16>
    %c2_23 = arith.constant 2 : index
    %c0_24 = arith.constant 0 : index
    %c0_25 = arith.constant 0 : index
    %36 = vector.load %arg4[%c2_23, %c0_24, %c0_25] : memref<4x128x128xbf16, #tpu.memory_space<vmem>>, vector<1x128x128xbf16>
    %37 = vector.shape_cast %36 : vector<1x128x128xbf16> to vector<128x128xbf16>
    %cst_26 = arith.constant dense<0.000000e+00> : vector<2x128xf32>
    %38 = tpu.matmul %35, %37, %cst_26 {dimension_numbers = #tpu.dot_dimension_numbers<[1], [0], [0], [1], [0, 0, 1, 1], [], []>} : vector<2x128xbf16>, vector<128x128xbf16>, vector<2x128xf32> -> vector<2x128xf32>
    %c4 = arith.constant 4 : index
    %c0_27 = arith.constant 0 : index
    %39 = vector.load %arg2[%c4, %c0_27] : memref<8x256xf32, #tpu.memory_space<vmem>>, vector<1x128xf32>
    %40 = vector.broadcast %39 : vector<1x128xf32> to vector<2x128xf32>
    %41 = arith.addf %38, %40 : vector<2x128xf32>
    %cst_28 = arith.constant 0.000000e+00 : f32
    %42 = vector.broadcast %cst_28 : f32 to vector<2x128xf32>
    %43 = arith.maximumf %41, %42 : vector<2x128xf32>
    %44 = arith.truncf %43 : vector<2x128xf32> to vector<2x128xbf16>
    %c3_29 = arith.constant 3 : index
    %c0_30 = arith.constant 0 : index
    %c0_31 = arith.constant 0 : index
    %45 = vector.load %arg4[%c3_29, %c0_30, %c0_31] : memref<4x128x128xbf16, #tpu.memory_space<vmem>>, vector<1x128x128xbf16>
    %46 = vector.shape_cast %45 : vector<1x128x128xbf16> to vector<128x128xbf16>
    %cst_32 = arith.constant dense<0.000000e+00> : vector<2x128xf32>
    %47 = tpu.matmul %44, %46, %cst_32 {dimension_numbers = #tpu.dot_dimension_numbers<[1], [0], [0], [1], [0, 0, 1, 1], [], []>} : vector<2x128xbf16>, vector<128x128xbf16>, vector<2x128xf32> -> vector<2x128xf32>
    %c5 = arith.constant 5 : index
    %c0_33 = arith.constant 0 : index
    %48 = vector.load %arg2[%c5, %c0_33] : memref<8x256xf32, #tpu.memory_space<vmem>>, vector<1x128xf32>
    %49 = vector.broadcast %48 : vector<1x128xf32> to vector<2x128xf32>
    %50 = arith.addf %47, %49 : vector<2x128xf32>
    %c0_34 = arith.constant 0 : index
    %c0_35 = arith.constant 0 : index
    %51 = vector.load %arg5[%c0_34, %c0_35] : memref<2x128xf32, #tpu.memory_space<vmem>>, vector<2x128xf32>
    tpu.vector_store %arg5[%c0_34, %c0_35], %50 {strides = array<i32>} : memref<2x128xf32, #tpu.memory_space<vmem>>, vector<2x128xf32>,
    return
  }
}

</mosaic_0001>

<llo_original>
// kernel: extended_mlp_forward.1
$region0: #{extended_mlp_forward.1}
  #allocation0 [shape = 'u32[]', space=smem, size = 0x4, offset = 0x4, fixed_abs, tag = 'smem constant byte address 0x4 - core index']
  #allocation1 [shape = 'u32[144,128]{1,0:T(1,128)}', space=vmem, size = 0x12000, scoped, tag = 'internal scratch']
  %s0 = inlined_call_operand.vmem [shape: f32[2,1024], index: 0, kind: input, shape index: {}]
  %s1 = inlined_call_operand.vmem [shape: bf16[1024,132], index: 1, kind: input, shape index: {}]
  %s2 = inlined_call_operand.vmem [shape: f32[8,256], index: 2, kind: input, shape index: {}]
  %s3 = inlined_call_operand.vmem [shape: bf16[132,128], index: 3, kind: input, shape index: {}]
  %s4 = inlined_call_operand.vmem [shape: bf16[4,128,128], index: 4, kind: input, shape index: {}]
  %s5 = inlined_call_operand.hbm [shape: f32[2,128], index: 5, kind: output, shape index: {}]
  %s6 = sld [smem:[#allocation0]]
  $region30: #{extended_mlp_forward.1} parent=0
    _
  %s8 = ssub.s32 1, %s6
  %s9 = scalar_select 0, %s8, %s6
  $region1: #{extended_mlp_forward.1} parent=0
    #allocation2 [shape = 'u8[1024]{0}', space=vmem, size = 0x400, scoped, tag = 'output window, operand 0, single buffered']
    #allocation3 [shape = 's32[1]{0}', space=sflag, size = 0x4, scoped, tag = 'scoped memory for extended_mlp_forward.1']
    %10 = vsyncpa [#allocation3], 0
    // Predicated region
    $region2: #{extended_mlp_forward.1} parent=1 // pred_check
      _
    $region3: #{extended_mlp_forward.1} parent=1 // pred_check_branch
      %12 = sbr.rel (0) target = $region5
    $region4: #{extended_mlp_forward.1} parent=1 // pred_region
      _
    $region5: #{extended_mlp_forward.1} parent=1 // pred_fallthru
      _
    // Predicated region
    $region6: #{extended_mlp_forward.1} parent=1 // pred_check
      _
    $region7: #{extended_mlp_forward.1} parent=1 // pred_check_branch
      %14 = sbr.rel (0) target = $region9
    $region8: #{extended_mlp_forward.1} parent=1 // pred_region
      _
    $region9: #{extended_mlp_forward.1} parent=1 // pred_fallthru
      _
    // Predicated region
    $region10: #{extended_mlp_forward.1} parent=1 // pred_check
      _
    $region11: #{extended_mlp_forward.1} parent=1 // pred_check_branch
      %16 = sbr.rel (0) target = $region13
    $region12: #{extended_mlp_forward.1} parent=1 // pred_region
      _
    $region13: #{extended_mlp_forward.1} parent=1 // pred_fallthru
      _
    // Predicated region
    $region14: #{extended_mlp_forward.1} parent=1 // pred_check
      _
    $region15: #{extended_mlp_forward.1} parent=1 // pred_check_branch
      %18 = sbr.rel (0) target = $region17
    $region16: #{extended_mlp_forward.1} parent=1 // pred_region
      _
    $region17: #{extended_mlp_forward.1} parent=1 // pred_fallthru
      _
    // Predicated region
    $region18: #{extended_mlp_forward.1} parent=1 // pred_check
      _
    $region19: #{extended_mlp_forward.1} parent=1 // pred_check_branch
      %20 = sbr.rel (0) target = $region21
    $region20: #{extended_mlp_forward.1} parent=1 // pred_region
      _
    $region21: #{extended_mlp_forward.1} parent=1 // pred_fallthru
      _
    %v22 = vld [vmem:[%s0] sm:$0xff]
    %v23 = vld [vmem:[%s0 + $0x8] sm:$0xff]
    %v26 = vcombine.high %v22, %v22
    %v28 = vunpack.c.l.s4 1983009808
    %v29 = vunpack.c.0.s8 %v28
    %v30 = vlaneseq
    %v31 = vshrl.u32 %v30, 7
    %v32 = vsub.s32 %v29, %v31
    %v33 = vrot.slane %v22, %v32
    %v35 = vunpack.c.l.s4 1983009808
    %v36 = vunpack.c.0.s8 %v35
    %v37 = vlaneseq
    %v38 = vshrl.u32 %v37, 7
    %v39 = vsub.s32 %v36, %v38
    %v40 = vrot.slane %v26, %v39
    %v41 = vcombine.high %v33, %v33
    %v42 = vcombine.high %v40, %v40
    %v43 = vcombine.high %v23, %v23
    %v45 = vunpack.c.l.s4 1983009808
    %v46 = vunpack.c.0.s8 %v45
    %v47 = vlaneseq
    %v48 = vshrl.u32 %v47, 7
    %v49 = vsub.s32 %v46, %v48
    %v50 = vrot.slane %v23, %v49
    %v52 = vunpack.c.l.s4 1983009808
    %v53 = vunpack.c.0.s8 %v52
    %v54 = vlaneseq
    %v55 = vshrl.u32 %v54, 7
    %v56 = vsub.s32 %v53, %v55
    %v57 = vrot.slane %v43, %v56
    %v58 = vcombine.high %v50, %v50
    %v59 = vcombine.high %v57, %v57
    %v68 = vpack.c.bf16 %v33, %v33
    %v69 = vpack.c.bf16 %v41, %v41
    %v70 = vpack.c.bf16 %v40, %v40
    %v71 = vpack.c.bf16 %v42, %v42
    %v72 = vpack.c.bf16 %v50, %v50
    %v73 = vpack.c.bf16 %v58, %v58
    %v74 = vpack.c.bf16 %v57, %v57
    %v75 = vpack.c.bf16 %v59, %v59
    %v76 = vld [vmem:[%s1] sm:$0xff]
    %v77 = vld [vmem:[%s1 + $0x8] sm:$0xff]
    %v78 = vld [vmem:[%s1 + $0x10] sm:$0xff]
    %v79 = vld [vmem:[%s1 + $0x18] sm:$0xff]
    %v80 = vld [vmem:[%s1 + $0x20] sm:$0xff]
    %v81 = vld [vmem:[%s1 + $0x28] sm:$0xff]
    %v82 = vld [vmem:[%s1 + $0x30] sm:$0xff]
    %v83 = vld [vmem:[%s1 + $0x38] sm:$0xff]
    %v84 = vld [vmem:[%s1 + $0x40] sm:$0xff]
    %v85 = vld [vmem:[%s1 + $0x48] sm:$0xff]
    %v86 = vld [vmem:[%s1 + $0x50] sm:$0xff]
    %v87 = vld [vmem:[%s1 + $0x58] sm:$0xff]
    %v88 = vld [vmem:[%s1 + $0x60] sm:$0xff]
    %v89 = vld [vmem:[%s1 + $0x68] sm:$0xff]
    %v90 = vld [vmem:[%s1 + $0x70] sm:$0xff]
    %v91 = vld [vmem:[%s1 + $0x78] sm:$0xff]
    %v92 = vld [vmem:[%s1 + $0x80] sm:$0xff]
    %v93 = vld [vmem:[%s1 + $0x88] sm:$0xff]
    %v94 = vld [vmem:[%s1 + $0x90] sm:$0xff]
    %v95 = vld [vmem:[%s1 + $0x98] sm:$0xff]
    %v96 = vld [vmem:[%s1 + $0xa0] sm:$0xff]
    %v97 = vld [vmem:[%s1 + $0xa8] sm:$0xff]
    %v98 = vld [vmem:[%s1 + $0xb0] sm:$0xff]
    %v99 = vld [vmem:[%s1 + $0xb8] sm:$0xff]
    %v100 = vld [vmem:[%s1 + $0xc0] sm:$0xff]
    %v101 = vld [vmem:[%s1 + $0xc8] sm:$0xff]
    %v102 = vld [vmem:[%s1 + $0xd0] sm:$0xff]
    %v103 = vld [vmem:[%s1 + $0xd8] sm:$0xff]
    %v104 = vld [vmem:[%s1 + $0xe0] sm:$0xff]
    %v105 = vld [vmem:[%s1 + $0xe8] sm:$0xff]
    %v106 = vld [vmem:[%s1 + $0xf0] sm:$0xff]
    %v107 = vld [vmem:[%s1 + $0xf8] sm:$0xff]
    %v108 = vld [vmem:[%s1 + $0x100] sm:$0xff]
    %v109 = vld [vmem:[%s1 + $0x108] sm:$0xff]
    %v110 = vld [vmem:[%s1 + $0x110] sm:$0xff]
    %v111 = vld [vmem:[%s1 + $0x118] sm:$0xff]
    %v112 = vld [vmem:[%s1 + $0x120] sm:$0xff]
    %v113 = vld [vmem:[%s1 + $0x128] sm:$0xff]
    %v114 = vld [vmem:[%s1 + $0x130] sm:$0xff]
    %v115 = vld [vmem:[%s1 + $0x138] sm:$0xff]
    %v116 = vld [vmem:[%s1 + $0x140] sm:$0xff]
    %v117 = vld [vmem:[%s1 + $0x148] sm:$0xff]
    %v118 = vld [vmem:[%s1 + $0x150] sm:$0xff]
    %v119 = vld [vmem:[%s1 + $0x158] sm:$0xff]
    %v120 = vld [vmem:[%s1 + $0x160] sm:$0xff]
    %v121 = vld [vmem:[%s1 + $0x168] sm:$0xff]
    %v122 = vld [vmem:[%s1 + $0x170] sm:$0xff]
    %v123 = vld [vmem:[%s1 + $0x178] sm:$0xff]
    %v124 = vld [vmem:[%s1 + $0x180] sm:$0xff]
    %v125 = vld [vmem:[%s1 + $0x188] sm:$0xff]
    %v126 = vld [vmem:[%s1 + $0x190] sm:$0xff]
    %v127 = vld [vmem:[%s1 + $0x198] sm:$0xff]
    %v128 = vld [vmem:[%s1 + $0x1a0] sm:$0xff]
    %v129 = vld [vmem:[%s1 + $0x1a8] sm:$0xff]
    %v130 = vld [vmem:[%s1 + $0x1b0] sm:$0xff]
    %v131 = vld [vmem:[%s1 + $0x1b8] sm:$0xff]
    %v132 = vld [vmem:[%s1 + $0x1c0] sm:$0xff]
    %v133 = vld [vmem:[%s1 + $0x1c8] sm:$0xff]
    %v134 = vld [vmem:[%s1 + $0x1d0] sm:$0xff]
    %v135 = vld [vmem:[%s1 + $0x1d8] sm:$0xff]
    %v136 = vld [vmem:[%s1 + $0x1e0] sm:$0xff]
    %v137 = vld [vmem:[%s1 + $0x1e8] sm:$0xff]
    %v138 = vld [vmem:[%s1 + $0x1f0] sm:$0xff]
    %v139 = vld [vmem:[%s1 + $0x1f8] sm:$0xff]
    %v140 = vld [vmem:[%s1 + $0x200] sm:$0xff]
    %v141 = vld [vmem:[%s1 + $0x208] sm:$0xff]
    %v142 = vld [vmem:[%s1 + $0x210] sm:$0xff]
    %v143 = vld [vmem:[%s1 + $0x218] sm:$0xff]
    %v144 = vld [vmem:[%s1 + $0x220] sm:$0xff]
    %v145 = vld [vmem:[%s1 + $0x228] sm:$0xff]
    %v146 = vld [vmem:[%s1 + $0x230] sm:$0xff]
    %v147 = vld [vmem:[%s1 + $0x238] sm:$0xff]
    %v148 = vld [vmem:[%s1 + $0x240] sm:$0xff]
    %v149 = vld [vmem:[%s1 + $0x248] sm:$0xff]
    %v150 = vld [vmem:[%s1 + $0x250] sm:$0xff]
    %v151 = vld [vmem:[%s1 + $0x258] sm:$0xff]
    %v152 = vld [vmem:[%s1 + $0x260] sm:$0xff]
    %v153 = vld [vmem:[%s1 + $0x268] sm:$0xff]
    %v154 = vld [vmem:[%s1 + $0x270] sm:$0xff]
    %v155 = vld [vmem:[%s1 + $0x278] sm:$0xff]
    %v156 = vld [vmem:[%s1 + $0x280] sm:$0xff]
    %v157 = vld [vmem:[%s1 + $0x288] sm:$0xff]
    %v158 = vld [vmem:[%s1 + $0x290] sm:$0xff]
    %v159 = vld [vmem:[%s1 + $0x298] sm:$0xff]
    %v160 = vld [vmem:[%s1 + $0x2a0] sm:$0xff]
    %v161 = vld [vmem:[%s1 + $0x2a8] sm:$0xff]
    %v162 = vld [vmem:[%s1 + $0x2b0] sm:$0xff]
    %v163 = vld [vmem:[%s1 + $0x2b8] sm:$0xff]
    %v164 = vld [vmem:[%s1 + $0x2c0] sm:$0xff]
    %v165 = vld [vmem:[%s1 + $0x2c8] sm:$0xff]
    %v166 = vld [vmem:[%s1 + $0x2d0] sm:$0xff]
    %v167 = vld [vmem:[%s1 + $0x2d8] sm:$0xff]
    %v168 = vld [vmem:[%s1 + $0x2e0] sm:$0xff]
    %v169 = vld [vmem:[%s1 + $0x2e8] sm:$0xff]
    %v170 = vld [vmem:[%s1 + $0x2f0] sm:$0xff]
    %v171 = vld [vmem:[%s1 + $0x2f8] sm:$0xff]
    %v172 = vld [vmem:[%s1 + $0x300] sm:$0xff]
    %v173 = vld [vmem:[%s1 + $0x308] sm:$0xff]
    %v174 = vld [vmem:[%s1 + $0x310] sm:$0xff]
    %v175 = vld [vmem:[%s1 + $0x318] sm:$0xff]
    %v176 = vld [vmem:[%s1 + $0x320] sm:$0xff]
    %v177 = vld [vmem:[%s1 + $0x328] sm:$0xff]
    %v178 = vld [vmem:[%s1 + $0x330] sm:$0xff]
    %v179 = vld [vmem:[%s1 + $0x338] sm:$0xff]
    %v180 = vld [vmem:[%s1 + $0x340] sm:$0xff]
    %v181 = vld [vmem:[%s1 + $0x348] sm:$0xff]
    %v182 = vld [vmem:[%s1 + $0x350] sm:$0xff]
    %v183 = vld [vmem:[%s1 + $0x358] sm:$0xff]
    %v184 = vld [vmem:[%s1 + $0x360] sm:$0xff]
    %v185 = vld [vmem:[%s1 + $0x368] sm:$0xff]
    %v186 = vld [vmem:[%s1 + $0x370] sm:$0xff]
    %v187 = vld [vmem:[%s1 + $0x378] sm:$0xff]
    %v188 = vld [vmem:[%s1 + $0x380] sm:$0xff]
    %v189 = vld [vmem:[%s1 + $0x388] sm:$0xff]
    %v190 = vld [vmem:[%s1 + $0x390] sm:$0xff]
    %v191 = vld [vmem:[%s1 + $0x398] sm:$0xff]
    %v192 = vld [vmem:[%s1 + $0x3a0] sm:$0xff]
    %v193 = vld [vmem:[%s1 + $0x3a8] sm:$0xff]
    %v194 = vld [vmem:[%s1 + $0x3b0] sm:$0xff]
    %v195 = vld [vmem:[%s1 + $0x3b8] sm:$0xff]
    %v196 = vld [vmem:[%s1 + $0x3c0] sm:$0xff]
    %v197 = vld [vmem:[%s1 + $0x3c8] sm:$0xff]
    %v198 = vld [vmem:[%s1 + $0x3d0] sm:$0xff]
    %v199 = vld [vmem:[%s1 + $0x3d8] sm:$0xff]
    %v200 = vld [vmem:[%s1 + $0x3e0] sm:$0xff]
    %v201 = vld [vmem:[%s1 + $0x3e8] sm:$0xff]
    %v202 = vld [vmem:[%s1 + $0x3f0] sm:$0xff]
    %v203 = vld [vmem:[%s1 + $0x3f8] sm:$0xff]
    %v204 = vld [vmem:[%s2] ss:$8 sm:$0x3]
    %v206 = vlaneseq
    %v207 = vshrl.u32 %v206, 7
    %v208 = vsub.s32 0, %v207
    %v209 = vrot.slane %v204, %v208
    %v210 = vlaneseq
    %v211 = vshrl.u32 %v210, 7
    %v212 = vsub.s32 1, %v211
    %v213 = vrot.slane %v204, %v212
    %v344 = vunpack.c.l.b16 %v76
    %v345 = vunpack.c.h.b16 %v76
    %v346 = vunpack.c.l.b16 %v77
    %v347 = vunpack.c.h.b16 %v77
    %v348 = vunpack.c.l.b16 %v78
    %v349 = vunpack.c.h.b16 %v78
    %v350 = vunpack.c.l.b16 %v79
    %v351 = vunpack.c.h.b16 %v79
    %v352 = vunpack.c.l.b16 %v80
    %v353 = vunpack.c.h.b16 %v80
    %v354 = vunpack.c.l.b16 %v81
    %v355 = vunpack.c.h.b16 %v81
    %v356 = vunpack.c.l.b16 %v82
    %v357 = vunpack.c.h.b16 %v82
    %v358 = vunpack.c.l.b16 %v83
    %v359 = vunpack.c.h.b16 %v83
    %v360 = vunpack.c.l.b16 %v84
    %v361 = vunpack.c.h.b16 %v84
    %v362 = vunpack.c.l.b16 %v85
    %v363 = vunpack.c.h.b16 %v85
    %v364 = vunpack.c.l.b16 %v86
    %v365 = vunpack.c.h.b16 %v86
    %v366 = vunpack.c.l.b16 %v87
    %v367 = vunpack.c.h.b16 %v87
    %v368 = vunpack.c.l.b16 %v88
    %v369 = vunpack.c.h.b16 %v88
    %v370 = vunpack.c.l.b16 %v89
    %v371 = vunpack.c.h.b16 %v89
    %v372 = vunpack.c.l.b16 %v90
    %v373 = vunpack.c.h.b16 %v90
    %v374 = vunpack.c.l.b16 %v91
    %v375 = vunpack.c.h.b16 %v91
    %v376 = vunpack.c.l.b16 %v92
    %v377 = vunpack.c.h.b16 %v92
    %v378 = vunpack.c.l.b16 %v93
    %v379 = vunpack.c.h.b16 %v93
    %v380 = vunpack.c.l.b16 %v94
    %v381 = vunpack.c.h.b16 %v94
    %v382 = vunpack.c.l.b16 %v95
    %v383 = vunpack.c.h.b16 %v95
    %v384 = vunpack.c.l.b16 %v96
    %v385 = vunpack.c.h.b16 %v96
    %v386 = vunpack.c.l.b16 %v97
    %v387 = vunpack.c.h.b16 %v97
    %v388 = vunpack.c.l.b16 %v98
    %v389 = vunpack.c.h.b16 %v98
    %v390 = vunpack.c.l.b16 %v99
    %v391 = vunpack.c.h.b16 %v99
    %v392 = vunpack.c.l.b16 %v100
    %v393 = vunpack.c.h.b16 %v100
    %v394 = vunpack.c.l.b16 %v101
    %v395 = vunpack.c.h.b16 %v101
    %v396 = vunpack.c.l.b16 %v102
    %v397 = vunpack.c.h.b16 %v102
    %v398 = vunpack.c.l.b16 %v103
    %v399 = vunpack.c.h.b16 %v103
    %v400 = vunpack.c.l.b16 %v104
    %v401 = vunpack.c.h.b16 %v104
    %v402 = vunpack.c.l.b16 %v105
    %v403 = vunpack.c.h.b16 %v105
    %v404 = vunpack.c.l.b16 %v106
    %v405 = vunpack.c.h.b16 %v106
    %v406 = vunpack.c.l.b16 %v107
    %v407 = vunpack.c.h.b16 %v107
    %v408 = vunpack.c.l.b16 %v108
    %v409 = vunpack.c.h.b16 %v108
    %v410 = vunpack.c.l.b16 %v109
    %v411 = vunpack.c.h.b16 %v109
    %v412 = vunpack.c.l.b16 %v110
    %v413 = vunpack.c.h.b16 %v110
    %v414 = vunpack.c.l.b16 %v111
    %v415 = vunpack.c.h.b16 %v111
    %v416 = vunpack.c.l.b16 %v112
    %v417 = vunpack.c.h.b16 %v112
    %v418 = vunpack.c.l.b16 %v113
    %v419 = vunpack.c.h.b16 %v113
    %v420 = vunpack.c.l.b16 %v114
    %v421 = vunpack.c.h.b16 %v114
    %v422 = vunpack.c.l.b16 %v115
    %v423 = vunpack.c.h.b16 %v115
    %v424 = vunpack.c.l.b16 %v116
    %v425 = vunpack.c.h.b16 %v116
    %v426 = vunpack.c.l.b16 %v117
    %v427 = vunpack.c.h.b16 %v117
    %v428 = vunpack.c.l.b16 %v118
    %v429 = vunpack.c.h.b16 %v118
    %v430 = vunpack.c.l.b16 %v119
    %v431 = vunpack.c.h.b16 %v119
    %v432 = vunpack.c.l.b16 %v120
    %v433 = vunpack.c.h.b16 %v120
    %v434 = vunpack.c.l.b16 %v121
    %v435 = vunpack.c.h.b16 %v121
    %v436 = vunpack.c.l.b16 %v122
    %v437 = vunpack.c.h.b16 %v122
    %v438 = vunpack.c.l.b16 %v123
    %v439 = vunpack.c.h.b16 %v123
    %v440 = vunpack.c.l.b16 %v124
    %v441 = vunpack.c.h.b16 %v124
    %v442 = vunpack.c.l.b16 %v125
    %v443 = vunpack.c.h.b16 %v125
    %v444 = vunpack.c.l.b16 %v126
    %v445 = vunpack.c.h.b16 %v126
    %v446 = vunpack.c.l.b16 %v127
    %v447 = vunpack.c.h.b16 %v127
    %v448 = vunpack.c.l.b16 %v128
    %v449 = vunpack.c.h.b16 %v128
    %v450 = vunpack.c.l.b16 %v129
    %v451 = vunpack.c.h.b16 %v129
    %v452 = vunpack.c.l.b16 %v130
    %v453 = vunpack.c.h.b16 %v130
    %v454 = vunpack.c.l.b16 %v131
    %v455 = vunpack.c.h.b16 %v131
    %v456 = vunpack.c.l.b16 %v132
    %v457 = vunpack.c.h.b16 %v132
    %v458 = vunpack.c.l.b16 %v133
    %v459 = vunpack.c.h.b16 %v133
    %v460 = vunpack.c.l.b16 %v134
    %v461 = vunpack.c.h.b16 %v134
    %v462 = vunpack.c.l.b16 %v135
    %v463 = vunpack.c.h.b16 %v135
    %v464 = vunpack.c.l.b16 %v136
    %v465 = vunpack.c.h.b16 %v136
    %v466 = vunpack.c.l.b16 %v137
    %v467 = vunpack.c.h.b16 %v137
    %v468 = vunpack.c.l.b16 %v138
    %v469 = vunpack.c.h.b16 %v138
    %v470 = vunpack.c.l.b16 %v139
    %v471 = vunpack.c.h.b16 %v139
    %v472 = vunpack.c.l.b16 %v140
    %v473 = vunpack.c.h.b16 %v140
    %v474 = vunpack.c.l.b16 %v141
    %v475 = vunpack.c.h.b16 %v141
    %v476 = vunpack.c.l.b16 %v142
    %v477 = vunpack.c.h.b16 %v142
    %v478 = vunpack.c.l.b16 %v143
    %v479 = vunpack.c.h.b16 %v143
    %v480 = vunpack.c.l.b16 %v144
    %v481 = vunpack.c.h.b16 %v144
    %v482 = vunpack.c.l.b16 %v145
    %v483 = vunpack.c.h.b16 %v145
    %v484 = vunpack.c.l.b16 %v146
    %v485 = vunpack.c.h.b16 %v146
    %v486 = vunpack.c.l.b16 %v147
    %v487 = vunpack.c.h.b16 %v147
    %v488 = vunpack.c.l.b16 %v148
    %v489 = vunpack.c.h.b16 %v148
    %v490 = vunpack.c.l.b16 %v149
    %v491 = vunpack.c.h.b16 %v149
    %v492 = vunpack.c.l.b16 %v150
    %v493 = vunpack.c.h.b16 %v150
    %v494 = vunpack.c.l.b16 %v151
    %v495 = vunpack.c.h.b16 %v151
    %v496 = vunpack.c.l.b16 %v152
    %v497 = vunpack.c.h.b16 %v152
    %v498 = vunpack.c.l.b16 %v153
    %v499 = vunpack.c.h.b16 %v153
    %v500 = vunpack.c.l.b16 %v154
    %v501 = vunpack.c.h.b16 %v154
    %v502 = vunpack.c.l.b16 %v155
    %v503 = vunpack.c.h.b16 %v155
    %v504 = vunpack.c.l.b16 %v156
    %v505 = vunpack.c.h.b16 %v156
    %v506 = vunpack.c.l.b16 %v157
    %v507 = vunpack.c.h.b16 %v157
    %v508 = vunpack.c.l.b16 %v158
    %v509 = vunpack.c.h.b16 %v158
    %v510 = vunpack.c.l.b16 %v159
    %v511 = vunpack.c.h.b16 %v159
    %v512 = vunpack.c.l.b16 %v160
    %v513 = vunpack.c.h.b16 %v160
    %v514 = vunpack.c.l.b16 %v161
    %v515 = vunpack.c.h.b16 %v161
    %v516 = vunpack.c.l.b16 %v162
    %v517 = vunpack.c.h.b16 %v162
    %v518 = vunpack.c.l.b16 %v163
    %v519 = vunpack.c.h.b16 %v163
    %v520 = vunpack.c.l.b16 %v164
    %v521 = vunpack.c.h.b16 %v164
    %v522 = vunpack.c.l.b16 %v165
    %v523 = vunpack.c.h.b16 %v165
    %v524 = vunpack.c.l.b16 %v166
    %v525 = vunpack.c.h.b16 %v166
    %v526 = vunpack.c.l.b16 %v167
    %v527 = vunpack.c.h.b16 %v167
    %v528 = vunpack.c.l.b16 %v168
    %v529 = vunpack.c.h.b16 %v168
    %v530 = vunpack.c.l.b16 %v169
    %v531 = vunpack.c.h.b16 %v169
    %v532 = vunpack.c.l.b16 %v170
    %v533 = vunpack.c.h.b16 %v170
    %v534 = vunpack.c.l.b16 %v171
    %v535 = vunpack.c.h.b16 %v171
    %v536 = vunpack.c.l.b16 %v172
    %v537 = vunpack.c.h.b16 %v172
    %v538 = vunpack.c.l.b16 %v173
    %v539 = vunpack.c.h.b16 %v173
    %v540 = vunpack.c.l.b16 %v174
    %v541 = vunpack.c.h.b16 %v174
    %v542 = vunpack.c.l.b16 %v175
    %v543 = vunpack.c.h.b16 %v175
    %v544 = vunpack.c.l.b16 %v176
    %v545 = vunpack.c.h.b16 %v176
    %v546 = vunpack.c.l.b16 %v177
    %v547 = vunpack.c.h.b16 %v177
    %v548 = vunpack.c.l.b16 %v178
    %v549 = vunpack.c.h.b16 %v178
    %v550 = vunpack.c.l.b16 %v179
    %v551 = vunpack.c.h.b16 %v179
    %v552 = vunpack.c.l.b16 %v180
    %v553 = vunpack.c.h.b16 %v180
    %v554 = vunpack.c.l.b16 %v181
    %v555 = vunpack.c.h.b16 %v181
    %v556 = vunpack.c.l.b16 %v182
    %v557 = vunpack.c.h.b16 %v182
    %v558 = vunpack.c.l.b16 %v183
    %v559 = vunpack.c.h.b16 %v183
    %v560 = vunpack.c.l.b16 %v184
    %v561 = vunpack.c.h.b16 %v184
    %v562 = vunpack.c.l.b16 %v185
    %v563 = vunpack.c.h.b16 %v185
    %v564 = vunpack.c.l.b16 %v186
    %v565 = vunpack.c.h.b16 %v186
    %v566 = vunpack.c.l.b16 %v187
    %v567 = vunpack.c.h.b16 %v187
    %v568 = vunpack.c.l.b16 %v188
    %v569 = vunpack.c.h.b16 %v188
    %v570 = vunpack.c.l.b16 %v189
    %v571 = vunpack.c.h.b16 %v189
    %v572 = vunpack.c.l.b16 %v190
    %v573 = vunpack.c.h.b16 %v190
    %v574 = vunpack.c.l.b16 %v191
    %v575 = vunpack.c.h.b16 %v191
    %v576 = vunpack.c.l.b16 %v192
    %v577 = vunpack.c.h.b16 %v192
    %v578 = vunpack.c.l.b16 %v193
    %v579 = vunpack.c.h.b16 %v193
    %v580 = vunpack.c.l.b16 %v194
    %v581 = vunpack.c.h.b16 %v194
    %v582 = vunpack.c.l.b16 %v195
    %v583 = vunpack.c.h.b16 %v195
    %v584 = vunpack.c.l.b16 %v196
    %v585 = vunpack.c.h.b16 %v196
    %v586 = vunpack.c.l.b16 %v197
    %v587 = vunpack.c.h.b16 %v197
    %v588 = vunpack.c.l.b16 %v198
    %v589 = vunpack.c.h.b16 %v198
    %v590 = vunpack.c.l.b16 %v199
    %v591 = vunpack.c.h.b16 %v199
    %v592 = vunpack.c.l.b16 %v200
    %v593 = vunpack.c.h.b16 %v200
    %v594 = vunpack.c.l.b16 %v201
    %v595 = vunpack.c.h.b16 %v201
    %v596 = vunpack.c.l.b16 %v202
    %v597 = vunpack.c.h.b16 %v202
    %v598 = vunpack.c.l.b16 %v203
    %v599 = vunpack.c.h.b16 %v203
    %v600 = vpack.c.b16 %v346, %v344
    %v601 = vpack.c.b16 %v347, %v345
    %v602 = vpack.c.b16 %v350, %v348
    %v603 = vpack.c.b16 %v351, %v349
    %v604 = vpack.c.b16 %v354, %v352
    %v605 = vpack.c.b16 %v355, %v353
    %v606 = vpack.c.b16 %v358, %v356
    %v607 = vpack.c.b16 %v359, %v357
    %v608 = vpack.c.b16 %v362, %v360
    %v609 = vpack.c.b16 %v363, %v361
    %v610 = vpack.c.b16 %v366, %v364
    %v611 = vpack.c.b16 %v367, %v365
    %v612 = vpack.c.b16 %v370, %v368
    %v613 = vpack.c.b16 %v371, %v369
    %v614 = vpack.c.b16 %v374, %v372
    %v615 = vpack.c.b16 %v375, %v373
    %v616 = vpack.c.b16 %v378, %v376
    %v617 = vpack.c.b16 %v379, %v377
    %v618 = vpack.c.b16 %v382, %v380
    %v619 = vpack.c.b16 %v383, %v381
    %v620 = vpack.c.b16 %v386, %v384
    %v621 = vpack.c.b16 %v387, %v385
    %v622 = vpack.c.b16 %v390, %v388
    %v623 = vpack.c.b16 %v391, %v389
    %v624 = vpack.c.b16 %v394, %v392
    %v625 = vpack.c.b16 %v395, %v393
    %v626 = vpack.c.b16 %v398, %v396
    %v627 = vpack.c.b16 %v399, %v397
    %v628 = vpack.c.b16 %v402, %v400
    %v629 = vpack.c.b16 %v403, %v401
    %v630 = vpack.c.b16 %v406, %v404
    %v631 = vpack.c.b16 %v407, %v405
    %v632 = vpack.c.b16 %v410, %v408
    %v633 = vpack.c.b16 %v411, %v409
    %v634 = vpack.c.b16 %v414, %v412
    %v635 = vpack.c.b16 %v415, %v413
    %v636 = vpack.c.b16 %v418, %v416
    %v637 = vpack.c.b16 %v419, %v417
    %v638 = vpack.c.b16 %v422, %v420
    %v639 = vpack.c.b16 %v423, %v421
    %v640 = vpack.c.b16 %v426, %v424
    %v641 = vpack.c.b16 %v427, %v425
    %v642 = vpack.c.b16 %v430, %v428
    %v643 = vpack.c.b16 %v431, %v429
    %v644 = vpack.c.b16 %v434, %v432
    %v645 = vpack.c.b16 %v435, %v433
    %v646 = vpack.c.b16 %v438, %v436
    %v647 = vpack.c.b16 %v439, %v437
    %v648 = vpack.c.b16 %v442, %v440
    %v649 = vpack.c.b16 %v443, %v441
    %v650 = vpack.c.b16 %v446, %v444
    %v651 = vpack.c.b16 %v447, %v445
    %v652 = vpack.c.b16 %v450, %v448
    %v653 = vpack.c.b16 %v451, %v449
    %v654 = vpack.c.b16 %v454, %v452
    %v655 = vpack.c.b16 %v455, %v453
    %v656 = vpack.c.b16 %v458, %v456
    %v657 = vpack.c.b16 %v459, %v457
    %v658 = vpack.c.b16 %v462, %v460
    %v659 = vpack.c.b16 %v463, %v461
    %v660 = vpack.c.b16 %v466, %v464
    %v661 = vpack.c.b16 %v467, %v465
    %v662 = vpack.c.b16 %v470, %v468
    %v663 = vpack.c.b16 %v471, %v469
    %v664 = vpack.c.b16 %v474, %v472
    %v665 = vpack.c.b16 %v475, %v473
    %v666 = vpack.c.b16 %v478, %v476
    %v667 = vpack.c.b16 %v479, %v477
    %v668 = vpack.c.b16 %v482, %v480
    %v669 = vpack.c.b16 %v483, %v481
    %v670 = vpack.c.b16 %v486, %v484
    %v671 = vpack.c.b16 %v487, %v485
    %v672 = vpack.c.b16 %v490, %v488
    %v673 = vpack.c.b16 %v491, %v489
    %v674 = vpack.c.b16 %v494, %v492
    %v675 = vpack.c.b16 %v495, %v493
    %v676 = vpack.c.b16 %v498, %v496
    %v677 = vpack.c.b16 %v499, %v497
    %v678 = vpack.c.b16 %v502, %v500
    %v679 = vpack.c.b16 %v503, %v501
    %v680 = vpack.c.b16 %v506, %v504
    %v681 = vpack.c.b16 %v507, %v505
    %v682 = vpack.c.b16 %v510, %v508
    %v683 = vpack.c.b16 %v511, %v509
    %v684 = vpack.c.b16 %v514, %v512
    %v685 = vpack.c.b16 %v515, %v513
    %v686 = vpack.c.b16 %v518, %v516
    %v687 = vpack.c.b16 %v519, %v517
    %v688 = vpack.c.b16 %v522, %v520
    %v689 = vpack.c.b16 %v523, %v521
    %v690 = vpack.c.b16 %v526, %v524
    %v691 = vpack.c.b16 %v527, %v525
    %v692 = vpack.c.b16 %v530, %v528
    %v693 = vpack.c.b16 %v531, %v529
    %v694 = vpack.c.b16 %v534, %v532
    %v695 = vpack.c.b16 %v535, %v533
    %v696 = vpack.c.b16 %v538, %v536
    %v697 = vpack.c.b16 %v539, %v537
    %v698 = vpack.c.b16 %v542, %v540
    %v699 = vpack.c.b16 %v543, %v541
    %v700 = vpack.c.b16 %v546, %v544
    %v701 = vpack.c.b16 %v547, %v545
    %v702 = vpack.c.b16 %v550, %v548
    %v703 = vpack.c.b16 %v551, %v549
    %v704 = vpack.c.b16 %v554, %v552
    %v705 = vpack.c.b16 %v555, %v553
    %v706 = vpack.c.b16 %v558, %v556
    %v707 = vpack.c.b16 %v559, %v557
    %v708 = vpack.c.b16 %v562, %v560
    %v709 = vpack.c.b16 %v563, %v561
    %v710 = vpack.c.b16 %v566, %v564
    %v711 = vpack.c.b16 %v567, %v565
    %v712 = vpack.c.b16 %v570, %v568
    %v713 = vpack.c.b16 %v571, %v569
    %v714 = vpack.c.b16 %v574, %v572
    %v715 = vpack.c.b16 %v575, %v573
    %v716 = vpack.c.b16 %v578, %v576
    %v717 = vpack.c.b16 %v579, %v577
    %v718 = vpack.c.b16 %v582, %v580
    %v719 = vpack.c.b16 %v583, %v581
    %v720 = vpack.c.b16 %v586, %v584
    %v721 = vpack.c.b16 %v587, %v585
    %v722 = vpack.c.b16 %v590, %v588
    %v723 = vpack.c.b16 %v591, %v589
    %v724 = vpack.c.b16 %v594, %v592
    %v725 = vpack.c.b16 %v595, %v593
    %v726 = vpack.c.b16 %v598, %v596
    %v727 = vpack.c.b16 %v599, %v597
    %856 = vmatprep.subr.bf16.mxu0 %v601
    %857 = vmatpush1.bf16.msra.mxu0 %v600
    %858 = vmatprep.subr.bf16.mxu0 %v603
    %859 = vmatpush1.bf16.msra.mxu0 %v602
    %860 = vmatprep.subr.bf16.mxu0 %v605
    %861 = vmatpush1.bf16.msra.mxu0 %v604
    %862 = vmatprep.subr.bf16.mxu0 %v607
    %863 = vmatpush1.bf16.msra.mxu0 %v606
    %864 = vmatprep.subr.bf16.mxu0 %v609
    %865 = vmatpush1.bf16.msra.mxu0 %v608
    %866 = vmatprep.subr.bf16.mxu0 %v611
    %867 = vmatpush1.bf16.msra.mxu0 %v610
    %868 = vmatprep.subr.bf16.mxu0 %v613
    %869 = vmatpush1.bf16.msra.mxu0 %v612
    %870 = vmatprep.subr.bf16.mxu0 %v615
    %871 = vmatpush1.bf16.msra.mxu0 %v614
    %872 = vmatprep.subr.bf16.mxu0 %v617
    %873 = vmatpush1.bf16.msra.mxu0 %v616
    %874 = vmatprep.subr.bf16.mxu0 %v619
    %875 = vmatpush1.bf16.msra.mxu0 %v618
    %876 = vmatprep.subr.bf16.mxu0 %v621
    %877 = vmatpush1.bf16.msra.mxu0 %v620
    %878 = vmatprep.subr.bf16.mxu0 %v623
    %879 = vmatpush1.bf16.msra.mxu0 %v622
    %880 = vmatprep.subr.bf16.mxu0 %v625
    %881 = vmatpush1.bf16.msra.mxu0 %v624
    %882 = vmatprep.subr.bf16.mxu0 %v627
    %883 = vmatpush1.bf16.msra.mxu0 %v626
    %884 = vmatprep.subr.bf16.mxu0 %v629
    %885 = vmatpush1.bf16.msra.mxu0 %v628
    %886 = vmatprep.subr.bf16.mxu0 %v631
    %887 = vmatpush1.bf16.msra.mxu0 %v630
    %888 = vmatprep.mubr.bf16.mxu0 %v69
    %889 = vmatmul.mubr.bf16.gmra.mrb[0].mxu0 %v68
    %v890 = vpop.f32.mrb[0].mxu0
    %v891 = vadd.f32 %v209, %v890
    %v892 = vpop.f32.mrb[0].mxu0
    %v893 = vadd.f32 %v213, %v892
    %v894 = vpop.f32.mrb[0].mxu0
    %v895 = vpop.f32.mrb[0].mxu0
    %896 = vdwg.mxu0
    %897 = vmatprep.subr.bf16.mxu0 %v633
    %898 = vmatpush1.bf16.msra.mxu0 %v632
    %899 = vmatprep.subr.bf16.mxu0 %v635
    %900 = vmatpush1.bf16.msra.mxu0 %v634
    %901 = vmatprep.subr.bf16.mxu0 %v637
    %902 = vmatpush1.bf16.msra.mxu0 %v636
    %903 = vmatprep.subr.bf16.mxu0 %v639
    %904 = vmatpush1.bf16.msra.mxu0 %v638
    %905 = vmatprep.subr.bf16.mxu0 %v641
    %906 = vmatpush1.bf16.msra.mxu0 %v640
    %907 = vmatprep.subr.bf16.mxu0 %v643
    %908 = vmatpush1.bf16.msra.mxu0 %v642
    %909 = vmatprep.subr.bf16.mxu0 %v645
    %910 = vmatpush1.bf16.msra.mxu0 %v644
    %911 = vmatprep.subr.bf16.mxu0 %v647
    %912 = vmatpush1.bf16.msra.mxu0 %v646
    %913 = vmatprep.subr.bf16.mxu0 %v649
    %914 = vmatpush1.bf16.msra.mxu0 %v648
    %915 = vmatprep.subr.bf16.mxu0 %v651
    %916 = vmatpush1.bf16.msra.mxu0 %v650
    %917 = vmatprep.subr.bf16.mxu0 %v653
    %918 = vmatpush1.bf16.msra.mxu0 %v652
    %919 = vmatprep.subr.bf16.mxu0 %v655
    %920 = vmatpush1.bf16.msra.mxu0 %v654
    %921 = vmatprep.subr.bf16.mxu0 %v657
    %922 = vmatpush1.bf16.msra.mxu0 %v656
    %923 = vmatprep.subr.bf16.mxu0 %v659
    %924 = vmatpush1.bf16.msra.mxu0 %v658
    %925 = vmatprep.subr.bf16.mxu0 %v661
    %926 = vmatpush1.bf16.msra.mxu0 %v660
    %927 = vmatprep.subr.bf16.mxu0 %v663
    %928 = vmatpush1.bf16.msra.mxu0 %v662
    %929 = vmatprep.mubr.bf16.mxu0 %v71
    %930 = vmatmul.mubr.bf16.gmra.mrb[0].mxu0 %v70
    %v931 = vpop.f32.mrb[0].mxu0
    %v932 = vadd.f32 %v891, %v931
    %v933 = vpop.f32.mrb[0].mxu0
    %v934 = vadd.f32 %v893, %v933
    %v935 = vpop.f32.mrb[0].mxu0
    %v936 = vpop.f32.mrb[0].mxu0
    %937 = vdwg.mxu0
    %938 = vmatprep.subr.bf16.mxu0 %v665
    %939 = vmatpush1.bf16.msra.mxu0 %v664
    %940 = vmatprep.subr.bf16.mxu0 %v667
    %941 = vmatpush1.bf16.msra.mxu0 %v666
    %942 = vmatprep.subr.bf16.mxu0 %v669
    %943 = vmatpush1.bf16.msra.mxu0 %v668
    %944 = vmatprep.subr.bf16.mxu0 %v671
    %945 = vmatpush1.bf16.msra.mxu0 %v670
    %946 = vmatprep.subr.bf16.mxu0 %v673
    %947 = vmatpush1.bf16.msra.mxu0 %v672
    %948 = vmatprep.subr.bf16.mxu0 %v675
    %949 = vmatpush1.bf16.msra.mxu0 %v674
    %950 = vmatprep.subr.bf16.mxu0 %v677
    %951 = vmatpush1.bf16.msra.mxu0 %v676
    %952 = vmatprep.subr.bf16.mxu0 %v679
    %953 = vmatpush1.bf16.msra.mxu0 %v678
    %954 = vmatprep.subr.bf16.mxu0 %v681
    %955 = vmatpush1.bf16.msra.mxu0 %v680
    %956 = vmatprep.subr.bf16.mxu0 %v683
    %957 = vmatpush1.bf16.msra.mxu0 %v682
    %958 = vmatprep.subr.bf16.mxu0 %v685
    %959 = vmatpush1.bf16.msra.mxu0 %v684
    %960 = vmatprep.subr.bf16.mxu0 %v687
    %961 = vmatpush1.bf16.msra.mxu0 %v686
    %962 = vmatprep.subr.bf16.mxu0 %v689
    %963 = vmatpush1.bf16.msra.mxu0 %v688
    %964 = vmatprep.subr.bf16.mxu0 %v691
    %965 = vmatpush1.bf16.msra.mxu0 %v690
    %966 = vmatprep.subr.bf16.mxu0 %v693
    %967 = vmatpush1.bf16.msra.mxu0 %v692
    %968 = vmatprep.subr.bf16.mxu0 %v695
    %969 = vmatpush1.bf16.msra.mxu0 %v694
    %970 = vmatprep.mubr.bf16.mxu0 %v73
    %971 = vmatmul.mubr.bf16.gmra.mrb[0].mxu0 %v72
    %v972 = vpop.f32.mrb[0].mxu0
    %v973 = vadd.f32 %v932, %v972
    %v974 = vpop.f32.mrb[0].mxu0
    %v975 = vadd.f32 %v934, %v974
    %v976 = vpop.f32.mrb[0].mxu0
    %v977 = vpop.f32.mrb[0].mxu0
    %978 = vdwg.mxu0
    %979 = vmatprep.subr.bf16.mxu0 %v697
    %980 = vmatpush1.bf16.msra.mxu0 %v696
    %981 = vmatprep.subr.bf16.mxu0 %v699
    %982 = vmatpush1.bf16.msra.mxu0 %v698
    %983 = vmatprep.subr.bf16.mxu0 %v701
    %984 = vmatpush1.bf16.msra.mxu0 %v700
    %985 = vmatprep.subr.bf16.mxu0 %v703
    %986 = vmatpush1.bf16.msra.mxu0 %v702
    %987 = vmatprep.subr.bf16.mxu0 %v705
    %988 = vmatpush1.bf16.msra.mxu0 %v704
    %989 = vmatprep.subr.bf16.mxu0 %v707
    %990 = vmatpush1.bf16.msra.mxu0 %v706
    %991 = vmatprep.subr.bf16.mxu0 %v709
    %992 = vmatpush1.bf16.msra.mxu0 %v708
    %993 = vmatprep.subr.bf16.mxu0 %v711
    %994 = vmatpush1.bf16.msra.mxu0 %v710
    %995 = vmatprep.subr.bf16.mxu0 %v713
    %996 = vmatpush1.bf16.msra.mxu0 %v712
    %997 = vmatprep.subr.bf16.mxu0 %v715
    %998 = vmatpush1.bf16.msra.mxu0 %v714
    %999 = vmatprep.subr.bf16.mxu0 %v717
    %1000 = vmatpush1.bf16.msra.mxu0 %v716
    %1001 = vmatprep.subr.bf16.mxu0 %v719
    %1002 = vmatpush1.bf16.msra.mxu0 %v718
    %1003 = vmatprep.subr.bf16.mxu0 %v721
    %1004 = vmatpush1.bf16.msra.mxu0 %v720
    %1005 = vmatprep.subr.bf16.mxu0 %v723
    %1006 = vmatpush1.bf16.msra.mxu0 %v722
    %1007 = vmatprep.subr.bf16.mxu0 %v725
    %1008 = vmatpush1.bf16.msra.mxu0 %v724
    %1009 = vmatprep.subr.bf16.mxu0 %v727
    %1010 = vmatpush1.bf16.msra.mxu0 %v726
    %1011 = vmatprep.mubr.bf16.mxu0 %v75
    %1012 = vmatmul.mubr.bf16.gmra.mrb[0].mxu0 %v74
    %v1013 = vpop.f32.mrb[0].mxu0
    %v1014 = vadd.f32 %v973, %v1013
    %v1015 = vpop.f32.mrb[0].mxu0
    %v1016 = vadd.f32 %v975, %v1015
    %v1017 = vpop.f32.mrb[0].mxu0
    %v1018 = vpop.f32.mrb[0].mxu0
    %1019 = vdwg.mxu0
    %v1020 = vmax.f32 %v1014, 0.0
    %v1021 = vmax.f32 %v1016, 0.0
    %v1022 = vpack.c.bf16 %v1020, %v1020
    %v1023 = vpack.c.bf16 %v1021, %v1021
    %v1024 = vld [vmem:[%s3] sm:$0xf]
    %v1025 = vld [vmem:[%s3 + $0x4] sm:$0xf]
    %v1026 = vld [vmem:[%s3 + $0x8] sm:$0xf]
    %v1027 = vld [vmem:[%s3 + $0xc] sm:$0xf]
    %v1028 = vld [vmem:[%s3 + $0x10] sm:$0xf]
    %v1029 = vld [vmem:[%s3 + $0x14] sm:$0xf]
    %v1030 = vld [vmem:[%s3 + $0x18] sm:$0xf]
    %v1031 = vld [vmem:[%s3 + $0x1c] sm:$0xf]
    %v1032 = vld [vmem:[%s3 + $0x20] sm:$0xf]
    %v1033 = vld [vmem:[%s3 + $0x24] sm:$0xf]
    %v1034 = vld [vmem:[%s3 + $0x28] sm:$0xf]
    %v1035 = vld [vmem:[%s3 + $0x2c] sm:$0xf]
    %v1036 = vld [vmem:[%s3 + $0x30] sm:$0xf]
    %v1037 = vld [vmem:[%s3 + $0x34] sm:$0xf]
    %v1038 = vld [vmem:[%s3 + $0x38] sm:$0xf]
    %v1039 = vld [vmem:[%s3 + $0x3c] sm:$0xf]
    %v1040 = vld [vmem:[%s3 + $0x40] sm:$0x3]
    %v1041 = vld [vmem:[%s2 + $0x1] ss:$0 sm:$0xff]
    %v1059 = vunpack.c.l.b16 %v1024
    %v1060 = vunpack.c.l.b16 %v1025
    %v1061 = vunpack.c.l.b16 %v1026
    %v1062 = vunpack.c.l.b16 %v1027
    %v1063 = vunpack.c.l.b16 %v1028
    %v1064 = vunpack.c.l.b16 %v1029
    %v1065 = vunpack.c.l.b16 %v1030
    %v1066 = vunpack.c.l.b16 %v1031
    %v1067 = vunpack.c.l.b16 %v1032
    %v1068 = vunpack.c.l.b16 %v1033
    %v1069 = vunpack.c.l.b16 %v1034
    %v1070 = vunpack.c.l.b16 %v1035
    %v1071 = vunpack.c.l.b16 %v1036
    %v1072 = vunpack.c.l.b16 %v1037
    %v1073 = vunpack.c.l.b16 %v1038
    %v1074 = vunpack.c.l.b16 %v1039
    %v1075 = vunpack.c.l.b16 %v1040
    %v1076 = vpack.c.b16 %v1060, %v1059
    %v1077 = vpack.c.b16 %v1062, %v1061
    %v1078 = vpack.c.b16 %v1064, %v1063
    %v1079 = vpack.c.b16 %v1066, %v1065
    %v1080 = vpack.c.b16 %v1068, %v1067
    %v1081 = vpack.c.b16 %v1070, %v1069
    %v1082 = vpack.c.b16 %v1072, %v1071
    %v1083 = vpack.c.b16 %v1074, %v1073
    %v1084 = vpack.c.b16 %v1075, %v1075
    %vm1093 = vcmask 31744
    %v1095 = vsel %vm1093, %v1023, 0
    %vm1097 = vcmask 1041408
    %v1099 = vsel %vm1097, %v1084, 0
    %1101 = vmatprep.subr.bf16.mxu0 0
    %1102 = vmatpush1.bf16.msra.mxu0 %v1076
    %1103 = vmatprep.subr.bf16.mxu0 0
    %1104 = vmatpush1.bf16.msra.mxu0 %v1077
    %1105 = vmatprep.subr.bf16.mxu0 0
    %1106 = vmatpush1.bf16.msra.mxu0 %v1078
    %1107 = vmatprep.subr.bf16.mxu0 0
    %1108 = vmatpush1.bf16.msra.mxu0 %v1079
    %1109 = vmatprep.subr.bf16.mxu0 0
    %1110 = vmatpush1.bf16.msra.mxu0 %v1080
    %1111 = vmatprep.subr.bf16.mxu0 0
    %1112 = vmatpush1.bf16.msra.mxu0 %v1081
    %1113 = vmatprep.subr.bf16.mxu0 0
    %1114 = vmatpush1.bf16.msra.mxu0 %v1082
    %1115 = vmatprep.subr.bf16.mxu0 0
    %1116 = vmatpush1.bf16.msra.mxu0 %v1083
    %1117 = vmatprep.subr.bf16.mxu0 0
    %1118 = vmatpush1.bf16.msra.mxu0 %v1099
    %1119 = vmatprep.subr.bf16.mxu0 0
    %1120 = vmatpush1.bf16.msra.mxu0 0
    %1121 = vmatprep.subr.bf16.mxu0 0
    %1122 = vmatpush1.bf16.msra.mxu0 0
    %1123 = vmatprep.subr.bf16.mxu0 0
    %1124 = vmatpush1.bf16.msra.mxu0 0
    %1125 = vmatprep.subr.bf16.mxu0 0
    %1126 = vmatpush1.bf16.msra.mxu0 0
    %1127 = vmatprep.subr.bf16.mxu0 0
    %1128 = vmatpush1.bf16.msra.mxu0 0
    %1129 = vmatprep.subr.bf16.mxu0 0
    %1130 = vmatpush1.bf16.msra.mxu0 0
    %1131 = vmatprep.subr.bf16.mxu0 0
    %1132 = vmatpush1.bf16.msra.mxu0 0
    %1133 = vmatprep.mubr.bf16.mxu0 %v1095
    %1134 = vmatmul.mubr.bf16.gmra.mrb[0].mxu0 %v1022
    %v1135 = vpop.f32.mrb[0].mxu0
    %v1136 = vadd.f32 %v1041, %v1135
    %v1137 = vpop.f32.mrb[0].mxu0
    %v1138 = vpop.f32.mrb[0].mxu0
    %v1139 = vpop.f32.mrb[0].mxu0
    %1140 = vdwg.mxu0
    %v1141 = vmax.f32 %v1136, 0.0
    %v1142 = vpack.c.bf16 %v1141, %v1141
    %v1143 = vld [vmem:[%s4] sm:$0xf]
    %v1144 = vld [vmem:[%s4 + $0x4] sm:$0xf]
    %v1145 = vld [vmem:[%s4 + $0x8] sm:$0xf]
    %v1146 = vld [vmem:[%s4 + $0xc] sm:$0xf]
    %v1147 = vld [vmem:[%s4 + $0x10] sm:$0xf]
    %v1148 = vld [vmem:[%s4 + $0x14] sm:$0xf]
    %v1149 = vld [vmem:[%s4 + $0x18] sm:$0xf]
    %v1150 = vld [vmem:[%s4 + $0x1c] sm:$0xf]
    %v1151 = vld [vmem:[%s4 + $0x20] sm:$0xf]
    %v1152 = vld [vmem:[%s4 + $0x24] sm:$0xf]
    %v1153 = vld [vmem:[%s4 + $0x28] sm:$0xf]
    %v1154 = vld [vmem:[%s4 + $0x2c] sm:$0xf]
    %v1155 = vld [vmem:[%s4 + $0x30] sm:$0xf]
    %v1156 = vld [vmem:[%s4 + $0x34] sm:$0xf]
    %v1157 = vld [vmem:[%s4 + $0x38] sm:$0xf]
    %v1158 = vld [vmem:[%s4 + $0x3c] sm:$0xf]
    %v1159 = vld [vmem:[%s2 + $0x2] ss:$0 sm:$0xff]
    %v1176 = vunpack.c.l.b16 %v1143
    %v1177 = vunpack.c.l.b16 %v1144
    %v1178 = vunpack.c.l.b16 %v1145
    %v1179 = vunpack.c.l.b16 %v1146
    %v1180 = vunpack.c.l.b16 %v1147
    %v1181 = vunpack.c.l.b16 %v1148
    %v1182 = vunpack.c.l.b16 %v1149
    %v1183 = vunpack.c.l.b16 %v1150
    %v1184 = vunpack.c.l.b16 %v1151
    %v1185 = vunpack.c.l.b16 %v1152
    %v1186 = vunpack.c.l.b16 %v1153
    %v1187 = vunpack.c.l.b16 %v1154
    %v1188 = vunpack.c.l.b16 %v1155
    %v1189 = vunpack.c.l.b16 %v1156
    %v1190 = vunpack.c.l.b16 %v1157
    %v1191 = vunpack.c.l.b16 %v1158
    %v1192 = vpack.c.b16 %v1177, %v1176
    %v1193 = vpack.c.b16 %v1179, %v1178
    %v1194 = vpack.c.b16 %v1181, %v1180
    %v1195 = vpack.c.b16 %v1183, %v1182
    %v1196 = vpack.c.b16 %v1185, %v1184
    %v1197 = vpack.c.b16 %v1187, %v1186
    %v1198 = vpack.c.b16 %v1189, %v1188
    %v1199 = vpack.c.b16 %v1191, %v1190
    %1208 = vmatprep.subr.bf16.mxu0 0
    %1209 = vmatpush1.bf16.msra.mxu0 %v1192
    %1210 = vmatprep.subr.bf16.mxu0 0
    %1211 = vmatpush1.bf16.msra.mxu0 %v1193
    %1212 = vmatprep.subr.bf16.mxu0 0
    %1213 = vmatpush1.bf16.msra.mxu0 %v1194
    %1214 = vmatprep.subr.bf16.mxu0 0
    %1215 = vmatpush1.bf16.msra.mxu0 %v1195
    %1216 = vmatprep.subr.bf16.mxu0 0
    %1217 = vmatpush1.bf16.msra.mxu0 %v1196
    %1218 = vmatprep.subr.bf16.mxu0 0
    %1219 = vmatpush1.bf16.msra.mxu0 %v1197
    %1220 = vmatprep.subr.bf16.mxu0 0
    %1221 = vmatpush1.bf16.msra.mxu0 %v1198
    %1222 = vmatprep.subr.bf16.mxu0 0
    %1223 = vmatpush1.bf16.msra.mxu0 %v1199
    %1224 = vmatprep.subr.bf16.mxu0 0
    %1225 = vmatpush1.bf16.msra.mxu0 0
    %1226 = vmatprep.subr.bf16.mxu0 0
    %1227 = vmatpush1.bf16.msra.mxu0 0
    %1228 = vmatprep.subr.bf16.mxu0 0
    %1229 = vmatpush1.bf16.msra.mxu0 0
    %1230 = vmatprep.subr.bf16.mxu0 0
    %1231 = vmatpush1.bf16.msra.mxu0 0
    %1232 = vmatprep.subr.bf16.mxu0 0
    %1233 = vmatpush1.bf16.msra.mxu0 0
    %1234 = vmatprep.subr.bf16.mxu0 0
    %1235 = vmatpush1.bf16.msra.mxu0 0
    %1236 = vmatprep.subr.bf16.mxu0 0
    %1237 = vmatpush1.bf16.msra.mxu0 0
    %1238 = vmatprep.subr.bf16.mxu0 0
    %1239 = vmatpush1.bf16.msra.mxu0 0
    %1240 = vmatprep.mubr.bf16.mxu0 0
    %1241 = vmatmul.mubr.bf16.gmra.mrb[0].mxu0 %v1142
    %v1242 = vpop.f32.mrb[0].mxu0
    %v1243 = vadd.f32 %v1159, %v1242
    %v1244 = vpop.f32.mrb[0].mxu0
    %v1245 = vpop.f32.mrb[0].mxu0
    %v1246 = vpop.f32.mrb[0].mxu0
    %1247 = vdwg.mxu0
    %v1248 = vmax.f32 %v1243, 0.0
    %v1249 = vpack.c.bf16 %v1248, %v1248
    %s1250 = scalar_lea.vmem %s4, 64
    %v1251 = vld [vmem:[%s1250] sm:$0xf]
    %v1252 = vld [vmem:[%s1250 + $0x4] sm:$0xf]
    %v1253 = vld [vmem:[%s1250 + $0x8] sm:$0xf]
    %v1254 = vld [vmem:[%s1250 + $0xc] sm:$0xf]
    %v1255 = vld [vmem:[%s1250 + $0x10] sm:$0xf]
    %v1256 = vld [vmem:[%s1250 + $0x14] sm:$0xf]
    %v1257 = vld [vmem:[%s1250 + $0x18] sm:$0xf]
    %v1258 = vld [vmem:[%s1250 + $0x1c] sm:$0xf]
    %v1259 = vld [vmem:[%s1250 + $0x20] sm:$0xf]
    %v1260 = vld [vmem:[%s1250 + $0x24] sm:$0xf]
    %v1261 = vld [vmem:[%s1250 + $0x28] sm:$0xf]
    %v1262 = vld [vmem:[%s1250 + $0x2c] sm:$0xf]
    %v1263 = vld [vmem:[%s1250 + $0x30] sm:$0xf]
    %v1264 = vld [vmem:[%s1250 + $0x34] sm:$0xf]
    %v1265 = vld [vmem:[%s1250 + $0x38] sm:$0xf]
    %v1266 = vld [vmem:[%s1250 + $0x3c] sm:$0xf]
    %v1267 = vld [vmem:[%s2 + $0x3] ss:$0 sm:$0xff]
    %v1284 = vunpack.c.l.b16 %v1251
    %v1285 = vunpack.c.l.b16 %v1252
    %v1286 = vunpack.c.l.b16 %v1253
    %v1287 = vunpack.c.l.b16 %v1254
    %v1288 = vunpack.c.l.b16 %v1255
    %v1289 = vunpack.c.l.b16 %v1256
    %v1290 = vunpack.c.l.b16 %v1257
    %v1291 = vunpack.c.l.b16 %v1258
    %v1292 = vunpack.c.l.b16 %v1259
    %v1293 = vunpack.c.l.b16 %v1260
    %v1294 = vunpack.c.l.b16 %v1261
    %v1295 = vunpack.c.l.b16 %v1262
    %v1296 = vunpack.c.l.b16 %v1263
    %v1297 = vunpack.c.l.b16 %v1264
    %v1298 = vunpack.c.l.b16 %v1265
    %v1299 = vunpack.c.l.b16 %v1266
    %v1300 = vpack.c.b16 %v1285, %v1284
    %v1301 = vpack.c.b16 %v1287, %v1286
    %v1302 = vpack.c.b16 %v1289, %v1288
    %v1303 = vpack.c.b16 %v1291, %v1290
    %v1304 = vpack.c.b16 %v1293, %v1292
    %v1305 = vpack.c.b16 %v1295, %v1294
    %v1306 = vpack.c.b16 %v1297, %v1296
    %v1307 = vpack.c.b16 %v1299, %v1298
    %1316 = vmatprep.subr.bf16.mxu0 0
    %1317 = vmatpush1.bf16.msra.mxu0 %v1300
    %1318 = vmatprep.subr.bf16.mxu0 0
    %1319 = vmatpush1.bf16.msra.mxu0 %v1301
    %1320 = vmatprep.subr.bf16.mxu0 0
    %1321 = vmatpush1.bf16.msra.mxu0 %v1302
    %1322 = vmatprep.subr.bf16.mxu0 0
    %1323 = vmatpush1.bf16.msra.mxu0 %v1303
    %1324 = vmatprep.subr.bf16.mxu0 0
    %1325 = vmatpush1.bf16.msra.mxu0 %v1304
    %1326 = vmatprep.subr.bf16.mxu0 0
    %1327 = vmatpush1.bf16.msra.mxu0 %v1305
    %1328 = vmatprep.subr.bf16.mxu0 0
    %1329 = vmatpush1.bf16.msra.mxu0 %v1306
    %1330 = vmatprep.subr.bf16.mxu0 0
    %1331 = vmatpush1.bf16.msra.mxu0 %v1307
    %1332 = vmatprep.subr.bf16.mxu0 0
    %1333 = vmatpush1.bf16.msra.mxu0 0
    %1334 = vmatprep.subr.bf16.mxu0 0
    %1335 = vmatpush1.bf16.msra.mxu0 0
    %1336 = vmatprep.subr.bf16.mxu0 0
    %1337 = vmatpush1.bf16.msra.mxu0 0
    %1338 = vmatprep.subr.bf16.mxu0 0
    %1339 = vmatpush1.bf16.msra.mxu0 0
    %1340 = vmatprep.subr.bf16.mxu0 0
    %1341 = vmatpush1.bf16.msra.mxu0 0
    %1342 = vmatprep.subr.bf16.mxu0 0
    %1343 = vmatpush1.bf16.msra.mxu0 0
    %1344 = vmatprep.subr.bf16.mxu0 0
    %1345 = vmatpush1.bf16.msra.mxu0 0
    %1346 = vmatprep.subr.bf16.mxu0 0
    %1347 = vmatpush1.bf16.msra.mxu0 0
    %1348 = vmatprep.mubr.bf16.mxu0 0
    %1349 = vmatmul.mubr.bf16.gmra.mrb[0].mxu0 %v1249
    %v1350 = vpop.f32.mrb[0].mxu0
    %v1351 = vadd.f32 %v1267, %v1350
    %v1352 = vpop.f32.mrb[0].mxu0
    %v1353 = vpop.f32.mrb[0].mxu0
    %v1354 = vpop.f32.mrb[0].mxu0
    %1355 = vdwg.mxu0
    %v1356 = vmax.f32 %v1351, 0.0
    %v1357 = vpack.c.bf16 %v1356, %v1356
    %s1358 = scalar_lea.vmem %s4, 128
    %v1359 = vld [vmem:[%s1358] sm:$0xf]
    %v1360 = vld [vmem:[%s1358 + $0x4] sm:$0xf]
    %v1361 = vld [vmem:[%s1358 + $0x8] sm:$0xf]
    %v1362 = vld [vmem:[%s1358 + $0xc] sm:$0xf]
    %v1363 = vld [vmem:[%s1358 + $0x10] sm:$0xf]
    %v1364 = vld [vmem:[%s1358 + $0x14] sm:$0xf]
    %v1365 = vld [vmem:[%s1358 + $0x18] sm:$0xf]
    %v1366 = vld [vmem:[%s1358 + $0x1c] sm:$0xf]
    %v1367 = vld [vmem:[%s1358 + $0x20] sm:$0xf]
    %v1368 = vld [vmem:[%s1358 + $0x24] sm:$0xf]
    %v1369 = vld [vmem:[%s1358 + $0x28] sm:$0xf]
    %v1370 = vld [vmem:[%s1358 + $0x2c] sm:$0xf]
    %v1371 = vld [vmem:[%s1358 + $0x30] sm:$0xf]
    %v1372 = vld [vmem:[%s1358 + $0x34] sm:$0xf]
    %v1373 = vld [vmem:[%s1358 + $0x38] sm:$0xf]
    %v1374 = vld [vmem:[%s1358 + $0x3c] sm:$0xf]
    %v1375 = vld [vmem:[%s2 + $0x4] ss:$0 sm:$0xff]
    %v1392 = vunpack.c.l.b16 %v1359
    %v1393 = vunpack.c.l.b16 %v1360
    %v1394 = vunpack.c.l.b16 %v1361
    %v1395 = vunpack.c.l.b16 %v1362
    %v1396 = vunpack.c.l.b16 %v1363
    %v1397 = vunpack.c.l.b16 %v1364
    %v1398 = vunpack.c.l.b16 %v1365
    %v1399 = vunpack.c.l.b16 %v1366
    %v1400 = vunpack.c.l.b16 %v1367
    %v1401 = vunpack.c.l.b16 %v1368
    %v1402 = vunpack.c.l.b16 %v1369
    %v1403 = vunpack.c.l.b16 %v1370
    %v1404 = vunpack.c.l.b16 %v1371
    %v1405 = vunpack.c.l.b16 %v1372
    %v1406 = vunpack.c.l.b16 %v1373
    %v1407 = vunpack.c.l.b16 %v1374
    %v1408 = vpack.c.b16 %v1393, %v1392
    %v1409 = vpack.c.b16 %v1395, %v1394
    %v1410 = vpack.c.b16 %v1397, %v1396
    %v1411 = vpack.c.b16 %v1399, %v1398
    %v1412 = vpack.c.b16 %v1401, %v1400
    %v1413 = vpack.c.b16 %v1403, %v1402
    %v1414 = vpack.c.b16 %v1405, %v1404
    %v1415 = vpack.c.b16 %v1407, %v1406
    %1424 = vmatprep.subr.bf16.mxu0 0
    %1425 = vmatpush1.bf16.msra.mxu0 %v1408
    %1426 = vmatprep.subr.bf16.mxu0 0
    %1427 = vmatpush1.bf16.msra.mxu0 %v1409
    %1428 = vmatprep.subr.bf16.mxu0 0
    %1429 = vmatpush1.bf16.msra.mxu0 %v1410
    %1430 = vmatprep.subr.bf16.mxu0 0
    %1431 = vmatpush1.bf16.msra.mxu0 %v1411
    %1432 = vmatprep.subr.bf16.mxu0 0
    %1433 = vmatpush1.bf16.msra.mxu0 %v1412
    %1434 = vmatprep.subr.bf16.mxu0 0
    %1435 = vmatpush1.bf16.msra.mxu0 %v1413
    %1436 = vmatprep.subr.bf16.mxu0 0
    %1437 = vmatpush1.bf16.msra.mxu0 %v1414
    %1438 = vmatprep.subr.bf16.mxu0 0
    %1439 = vmatpush1.bf16.msra.mxu0 %v1415
    %1440 = vmatprep.subr.bf16.mxu0 0
    %1441 = vmatpush1.bf16.msra.mxu0 0
    %1442 = vmatprep.subr.bf16.mxu0 0
    %1443 = vmatpush1.bf16.msra.mxu0 0
    %1444 = vmatprep.subr.bf16.mxu0 0
    %1445 = vmatpush1.bf16.msra.mxu0 0
    %1446 = vmatprep.subr.bf16.mxu0 0
    %1447 = vmatpush1.bf16.msra.mxu0 0
    %1448 = vmatprep.subr.bf16.mxu0 0
    %1449 = vmatpush1.bf16.msra.mxu0 0
    %1450 = vmatprep.subr.bf16.mxu0 0
    %1451 = vmatpush1.bf16.msra.mxu0 0
    %1452 = vmatprep.subr.bf16.mxu0 0
    %1453 = vmatpush1.bf16.msra.mxu0 0
    %1454 = vmatprep.subr.bf16.mxu0 0
    %1455 = vmatpush1.bf16.msra.mxu0 0
    %1456 = vmatprep.mubr.bf16.mxu0 0
    %1457 = vmatmul.mubr.bf16.gmra.mrb[0].mxu0 %v1357
    %v1458 = vpop.f32.mrb[0].mxu0
    %v1459 = vadd.f32 %v1375, %v1458
    %v1460 = vpop.f32.mrb[0].mxu0
    %v1461 = vpop.f32.mrb[0].mxu0
    %v1462 = vpop.f32.mrb[0].mxu0
    %1463 = vdwg.mxu0
    %v1464 = vmax.f32 %v1459, 0.0
    %v1465 = vpack.c.bf16 %v1464, %v1464
    %s1466 = scalar_lea.vmem %s4, 192
    %v1467 = vld [vmem:[%s1466] sm:$0xf]
    %v1468 = vld [vmem:[%s1466 + $0x4] sm:$0xf]
    %v1469 = vld [vmem:[%s1466 + $0x8] sm:$0xf]
    %v1470 = vld [vmem:[%s1466 + $0xc] sm:$0xf]
    %v1471 = vld [vmem:[%s1466 + $0x10] sm:$0xf]
    %v1472 = vld [vmem:[%s1466 + $0x14] sm:$0xf]
    %v1473 = vld [vmem:[%s1466 + $0x18] sm:$0xf]
    %v1474 = vld [vmem:[%s1466 + $0x1c] sm:$0xf]
    %v1475 = vld [vmem:[%s1466 + $0x20] sm:$0xf]
    %v1476 = vld [vmem:[%s1466 + $0x24] sm:$0xf]
    %v1477 = vld [vmem:[%s1466 + $0x28] sm:$0xf]
    %v1478 = vld [vmem:[%s1466 + $0x2c] sm:$0xf]
    %v1479 = vld [vmem:[%s1466 + $0x30] sm:$0xf]
    %v1480 = vld [vmem:[%s1466 + $0x34] sm:$0xf]
    %v1481 = vld [vmem:[%s1466 + $0x38] sm:$0xf]
    %v1482 = vld [vmem:[%s1466 + $0x3c] sm:$0xf]
    %v1483 = vld [vmem:[%s2 + $0x5] ss:$0 sm:$0xff]
    %v1500 = vunpack.c.l.b16 %v1467
    %v1501 = vunpack.c.l.b16 %v1468
    %v1502 = vunpack.c.l.b16 %v1469
    %v1503 = vunpack.c.l.b16 %v1470
    %v1504 = vunpack.c.l.b16 %v1471
    %v1505 = vunpack.c.l.b16 %v1472
    %v1506 = vunpack.c.l.b16 %v1473
    %v1507 = vunpack.c.l.b16 %v1474
    %v1508 = vunpack.c.l.b16 %v1475
    %v1509 = vunpack.c.l.b16 %v1476
    %v1510 = vunpack.c.l.b16 %v1477
    %v1511 = vunpack.c.l.b16 %v1478
    %v1512 = vunpack.c.l.b16 %v1479
    %v1513 = vunpack.c.l.b16 %v1480
    %v1514 = vunpack.c.l.b16 %v1481
    %v1515 = vunpack.c.l.b16 %v1482
    %v1516 = vpack.c.b16 %v1501, %v1500
    %v1517 = vpack.c.b16 %v1503, %v1502
    %v1518 = vpack.c.b16 %v1505, %v1504
    %v1519 = vpack.c.b16 %v1507, %v1506
    %v1520 = vpack.c.b16 %v1509, %v1508
    %v1521 = vpack.c.b16 %v1511, %v1510
    %v1522 = vpack.c.b16 %v1513, %v1512
    %v1523 = vpack.c.b16 %v1515, %v1514
    %1532 = vmatprep.subr.bf16.mxu0 0
    %1533 = vmatpush1.bf16.msra.mxu0 %v1516
    %1534 = vmatprep.subr.bf16.mxu0 0
    %1535 = vmatpush1.bf16.msra.mxu0 %v1517
    %1536 = vmatprep.subr.bf16.mxu0 0
    %1537 = vmatpush1.bf16.msra.mxu0 %v1518
    %1538 = vmatprep.subr.bf16.mxu0 0
    %1539 = vmatpush1.bf16.msra.mxu0 %v1519
    %1540 = vmatprep.subr.bf16.mxu0 0
    %1541 = vmatpush1.bf16.msra.mxu0 %v1520
    %1542 = vmatprep.subr.bf16.mxu0 0
    %1543 = vmatpush1.bf16.msra.mxu0 %v1521
    %1544 = vmatprep.subr.bf16.mxu0 0
    %1545 = vmatpush1.bf16.msra.mxu0 %v1522
    %1546 = vmatprep.subr.bf16.mxu0 0
    %1547 = vmatpush1.bf16.msra.mxu0 %v1523
    %1548 = vmatprep.subr.bf16.mxu0 0
    %1549 = vmatpush1.bf16.msra.mxu0 0
    %1550 = vmatprep.subr.bf16.mxu0 0
    %1551 = vmatpush1.bf16.msra.mxu0 0
    %1552 = vmatprep.subr.bf16.mxu0 0
    %1553 = vmatpush1.bf16.msra.mxu0 0
    %1554 = vmatprep.subr.bf16.mxu0 0
    %1555 = vmatpush1.bf16.msra.mxu0 0
    %1556 = vmatprep.subr.bf16.mxu0 0
    %1557 = vmatpush1.bf16.msra.mxu0 0
    %1558 = vmatprep.subr.bf16.mxu0 0
    %1559 = vmatpush1.bf16.msra.mxu0 0
    %1560 = vmatprep.subr.bf16.mxu0 0
    %1561 = vmatpush1.bf16.msra.mxu0 0
    %1562 = vmatprep.subr.bf16.mxu0 0
    %1563 = vmatpush1.bf16.msra.mxu0 0
    %1564 = vmatprep.mubr.bf16.mxu0 0
    %1565 = vmatmul.mubr.bf16.gmra.mrb[0].mxu0 %v1465
    %v1566 = vpop.f32.mrb[0].mxu0
    %v1567 = vadd.f32 %v1483, %v1566
    %v1568 = vpop.f32.mrb[0].mxu0
    %v1569 = vpop.f32.mrb[0].mxu0
    %v1570 = vpop.f32.mrb[0].mxu0
    %1571 = vdwg.mxu0
    %1572 = vst [vmem:[#allocation2] sm:$0x3] %v1567
    // Predicated region
    $region22: #{extended_mlp_forward.1} parent=1 // pred_check
      _
    $region23: #{extended_mlp_forward.1} parent=1 // pred_check_branch
      %1574 = sbr.rel (0) target = $region25
    $region24: #{extended_mlp_forward.1} parent=1 // pred_region
      %s1576 = ssub.s32 32, 32
      %1577 = vsyncadd [#allocation3], %s1576
      %s1579 = sshll.u32 [#allocation2], 4
      %s1580 = int_to_ptr.vmem [resolvable:$true] %s1579
      %1582 = dma.vmem_to_hbm [thread:$0]  %s1580, 32, %s5, [#allocation3]
    $region25: #{extended_mlp_forward.1} parent=1 // pred_fallthru
      _
    // Predicated region
    $region26: #{extended_mlp_forward.1} parent=1 // pred_check
      _
    $region27: #{extended_mlp_forward.1} parent=1 // pred_check_branch
      %1584 = sbr.rel (0) target = $region29
    $region28: #{extended_mlp_forward.1} parent=1 // pred_region
      %1585 = dma.done [#allocation3], 32
    $region29: #{extended_mlp_forward.1} parent=1 // pred_fallthru
      _
    %1586 = vsyncpa [#allocation3], 1

</llo_original>
